<compile_context>
chip_gen: v7x
topology: tpu7x:2x2x1
jax: 0.10.0
libtpu: 0.0.40
codegen_flags: <defaults>
</compile_context>

<pallas_src>
import numpy as np
import jax
import jax.numpy as jnp
from jax.experimental import pallas as pl
from jax.experimental.pallas import tpu as pltpu

EPS = float(np.finfo(np.float32).eps)  # matches np.finfo(np.float32).eps in the torch code


class ForwardPolicyPallas:
    def __init__(self, state_size, action_size, h_size, n_layers,
                 threshold, return_scale, horizon_scale, key):
        self.state_size = state_size
        self.action_size = action_size
        self.threshold = threshold            # training-only, unused in forward
        self.return_scale = return_scale
        self.horizon_scale = horizon_scale
        self.n_layers = n_layers

        first_dim = state_size + action_size + 2
        dims = [first_dim] + [h_size] * n_layers

        # nn.Linear-style init U(-1/sqrt(in), 1/sqrt(in)); weights are stored
        # PRE-TRANSPOSED as (in, out) and biases as (1, out) so nothing is
        # transposed / reshaped at call time.
        self.params = []
        for d in range(len(dims) - 1):
            fan_in, fan_out = dims[d], dims[d + 1]
            key, kw, kb = jax.random.split(key, 3)
            bound = 1.0 / np.sqrt(fan_in)
            w = jax.random.uniform(kw, (fan_out, fan_in), jnp.float32, -bound, bound)
            b = jax.random.uniform(kb, (fan_out,), jnp.float32, -bound, bound)
            self.params.append((jnp.asarray(w.T), b.reshape(1, fan_out)))

        # Per-action command scale: combine_transitions scales the command
        # tensor in place, so action a sees command * scale^(a+1).
        sc = np.array([return_scale, horizon_scale], np.float32)
        acc = np.ones(2, np.float32)
        rows = []
        for _ in range(action_size):
            acc = (acc * sc).astype(np.float32)
            rows.append(acc.copy())
        self.cmd_scales = jnp.asarray(np.stack(rows))          # (A, 2)

        self._forward = jax.jit(self._build_forward())

    # ------------------------- fused Pallas forward ------------------------- #

    def _build_forward(self):
        A = self.action_size
        S = self.state_size
        n_layers = self.n_layers
        din0 = S + A + 2

        def kernel(state_ref, cmd_ref, scales_ref, *rest):
            param_refs = rest[:2 * n_layers]
            out_ref = rest[2 * n_layers]
            x0_ref = rest[2 * n_layers + 1]          # VMEM scratch (A*B, din0)

            B = state_ref.shape[0]
            AB = A * B

            state = state_ref[...]                   # (B, S)
            cmd = cmd_ref[...]                       # (B, 2)

            # --- assemble layer-0 input [state | one_hot(a) | scaled cmd] ----
            lane = jax.lax.broadcasted_iota(jnp.int32, (B, A), 1)
            for a in range(A):                       # A is a tiny static constant
                r0, r1 = a * B, (a + 1) * B
                x0_ref[r0:r1, 0:S] = state
                x0_ref[r0:r1, S:S + A] = (lane == a).astype(jnp.float32)
                x0_ref[r0:r1, S + A:S + A + 2] = cmd * scales_ref[a:a + 1, :]

            # ---------------- all layers: one MXU matmul per layer -----------
            x = x0_ref[...]                          # (AB, din0)
            g = jnp.zeros((AB, 1), jnp.float32)
            for l in range(n_layers):                # unrolled (static)
                wt = param_refs[2 * l][...]          # (din_l, dout)
                b = param_refs[2 * l + 1][...]       # (1, dout)
                inv = 1.0 / (jnp.sqrt(jnp.sum(x * x, axis=1, keepdims=True)) + EPS)
                y = jnp.dot(x * inv, wt, preferred_element_type=jnp.float32) + b
                y = jnp.maximum(y, 0.0)
                g = g + jnp.mean(y * y, axis=1, keepdims=True)
                x = y
            out_ref[...] = g                         # single consolidated store

        def forward(state, command, cmd_scales, *flat_params):
            B = state.shape[0]
            vmem = pl.BlockSpec(memory_space=pltpu.MemorySpace.VMEM)
            g = pl.pallas_call(
                kernel,
                out_shape=jax.ShapeDtypeStruct((A * B, 1), jnp.float32),
                in_specs=[vmem] * (3 + 2 * n_layers),
                out_specs=vmem,
                scratch_shapes=[pltpu.VMEM((A * B, din0), jnp.float32)],
            )(state, command, cmd_scales, *flat_params)
            return g.reshape(A * B)

        return forward

    def forward(self, state, command):
        """state: (B, state_size), command: (B, 2) -> (action_size * B,)"""
        flat = [p for wb in self.params for p in wb]
        return self._forward(state, command, self.cmd_scales, *flat)

    # ------------------- pure-jnp reference (no Pallas) --------------------- #

    def forward_ref(self, state, command):
        scale = jnp.array([self.return_scale, self.horizon_scale], jnp.float32)
        cmd = command
        outs = []
        for a in range(self.action_size):
            cmd = cmd * scale[None, :]       # in-place repeated scaling semantics
            onehot = jnp.zeros((state.shape[0], self.action_size),
                               jnp.float32).at[:, a].set(1.0)
            h = jnp.concatenate([state, onehot, cmd], axis=-1)
            goodness = 0.0
            for (wt, b) in self.params:
                norm = jnp.sqrt(jnp.sum(h * h, axis=1, keepdims=True))
                h = jnp.maximum((h / (norm + EPS)) @ wt + b, 0.0)
                goodness = goodness + jnp.mean(h * h, axis=1)
            outs.append(goodness)
        return jnp.concatenate(outs)

    # TODO(synk): Layer.train (Adam inner updates) and ForwardPolicy.act
    # multinomial sampling are host/training-side logic, not part of the
    # forward hot path, and are intentionally not implemented as kernels.


# ----------------------------------- main ----------------------------------- #

if __name__ == "__main__":
    STATE_SIZE = 4
    ACTION_SIZE = 3
    H_SIZE = 32
    N_LAYERS = 2
    BATCH = 2

    key = jax.random.PRNGKey(0)
    key, k_init, k_state, k_cmd = jax.random.split(key, 4)

    policy = ForwardPolicyPallas(
        state_size=STATE_SIZE,
        action_size=ACTION_SIZE,
        h_size=H_SIZE,
        n_layers=N_LAYERS,
        threshold=2.0,
        return_scale=0.02,
        horizon_scale=0.01,
        key=k_init,
    )

    state = jax.random.normal(k_state, (BATCH, STATE_SIZE), jnp.float32)
    command = jax.random.normal(k_cmd, (BATCH, 2), jnp.float32)

    out = jax.block_until_ready(policy.forward(state, command))
    ref = jax.block_until_ready(policy.forward_ref(state, command))

    assert out.shape == (ACTION_SIZE * BATCH,), out.shape
    np.testing.assert_allclose(np.asarray(out), np.asarray(ref), rtol=1e-5, atol=1e-5)

    print("KERNEL_OK")
</pallas_src>

<mosaic_0001>
module attributes {stable_mosaic.version = 11 : i64} {
  func.func @kernel(%arg0: memref<2x4xf32, #tpu.memory_space<vmem>>, %arg1: memref<2x2xf32, #tpu.memory_space<vmem>>, %arg2: memref<3x2xf32, #tpu.memory_space<vmem>>, %arg3: memref<9x32xf32, #tpu.memory_space<vmem>>, %arg4: memref<1x32xf32, #tpu.memory_space<vmem>>, %arg5: memref<32x32xf32, #tpu.memory_space<vmem>>, %arg6: memref<1x32xf32, #tpu.memory_space<vmem>>, %arg7: memref<6x1xf32, #tpu.memory_space<vmem>>, %arg8: memref<6x9xf32, #tpu.memory_space<vmem>>) attributes {dimension_semantics = [], scalar_prefetch = 0 : i64, scratch_operands = 1 : i64, tpu.core_type = #tpu.core_type<tc>} {
    %c0 = arith.constant 0 : index
    %c0_0 = arith.constant 0 : index
    %0 = vector.load %arg0[%c0, %c0_0] : memref<2x4xf32, #tpu.memory_space<vmem>>, vector<2x4xf32>
    %c0_1 = arith.constant 0 : index
    %c0_2 = arith.constant 0 : index
    %1 = vector.load %arg1[%c0_1, %c0_2] : memref<2x2xf32, #tpu.memory_space<vmem>>, vector<2x2xf32>
    %2 = tpu.iota {dimensions = array<i32: 1>} : vector<2x3xi32>
    %c0_3 = arith.constant 0 : index
    %c0_4 = arith.constant 0 : index
    %3 = vector.load %arg8[%c0_3, %c0_4] : memref<6x9xf32, #tpu.memory_space<vmem>>, vector<2x4xf32>
    tpu.vector_store %arg8[%c0_3, %c0_4], %0 {strides = array<i32>} : memref<6x9xf32, #tpu.memory_space<vmem>>, vector<2x4xf32>,
    %c0_i32 = arith.constant 0 : i32
    %4 = vector.broadcast %c0_i32 : i32 to vector<2x3xi32>
    %5 = arith.cmpi eq, %2, %4 : vector<2x3xi32>
    %6 = arith.extui %5 : vector<2x3xi1> to vector<2x3xi32>
    %7 = arith.sitofp %6 : vector<2x3xi32> to vector<2x3xf32>
    %c0_5 = arith.constant 0 : index
    %c4 = arith.constant 4 : index
    %8 = vector.load %arg8[%c0_5, %c4] : memref<6x9xf32, #tpu.memory_space<vmem>>, vector<2x3xf32>
    tpu.vector_store %arg8[%c0_5, %c4], %7 {strides = array<i32>} : memref<6x9xf32, #tpu.memory_space<vmem>>, vector<2x3xf32>,
    %c0_6 = arith.constant 0 : index
    %c0_7 = arith.constant 0 : index
    %9 = vector.load %arg2[%c0_6, %c0_7] : memref<3x2xf32, #tpu.memory_space<vmem>>, vector<1x2xf32>
    %10 = vector.broadcast %9 : vector<1x2xf32> to vector<2x2xf32>
    %11 = arith.mulf %1, %10 : vector<2x2xf32>
    %c0_8 = arith.constant 0 : index
    %c7 = arith.constant 7 : index
    %12 = vector.load %arg8[%c0_8, %c7] : memref<6x9xf32, #tpu.memory_space<vmem>>, vector<2x2xf32>
    tpu.vector_store %arg8[%c0_8, %c7], %11 {strides = array<i32>} : memref<6x9xf32, #tpu.memory_space<vmem>>, vector<2x2xf32>,
    %c2 = arith.constant 2 : index
    %c0_9 = arith.constant 0 : index
    %13 = vector.load %arg8[%c2, %c0_9] : memref<6x9xf32, #tpu.memory_space<vmem>>, vector<2x4xf32>
    tpu.vector_store %arg8[%c2, %c0_9], %0 {strides = array<i32>} : memref<6x9xf32, #tpu.memory_space<vmem>>, vector<2x4xf32>,
    %c1_i32 = arith.constant 1 : i32
    %14 = vector.broadcast %c1_i32 : i32 to vector<2x3xi32>
    %15 = arith.cmpi eq, %2, %14 : vector<2x3xi32>
    %16 = arith.extui %15 : vector<2x3xi1> to vector<2x3xi32>
    %17 = arith.sitofp %16 : vector<2x3xi32> to vector<2x3xf32>
    %c2_10 = arith.constant 2 : index
    %c4_11 = arith.constant 4 : index
    %18 = vector.load %arg8[%c2_10, %c4_11] : memref<6x9xf32, #tpu.memory_space<vmem>>, vector<2x3xf32>
    tpu.vector_store %arg8[%c2_10, %c4_11], %17 {strides = array<i32>} : memref<6x9xf32, #tpu.memory_space<vmem>>, vector<2x3xf32>,
    %c1 = arith.constant 1 : index
    %c0_12 = arith.constant 0 : index
    %19 = vector.load %arg2[%c1, %c0_12] : memref<3x2xf32, #tpu.memory_space<vmem>>, vector<1x2xf32>
    %20 = vector.broadcast %19 : vector<1x2xf32> to vector<2x2xf32>
    %21 = arith.mulf %1, %20 : vector<2x2xf32>
    %c2_13 = arith.constant 2 : index
    %c7_14 = arith.constant 7 : index
    %22 = vector.load %arg8[%c2_13, %c7_14] : memref<6x9xf32, #tpu.memory_space<vmem>>, vector<2x2xf32>
    tpu.vector_store %arg8[%c2_13, %c7_14], %21 {strides = array<i32>} : memref<6x9xf32, #tpu.memory_space<vmem>>, vector<2x2xf32>,
    %c4_15 = arith.constant 4 : index
    %c0_16 = arith.constant 0 : index
    %23 = vector.load %arg8[%c4_15, %c0_16] : memref<6x9xf32, #tpu.memory_space<vmem>>, vector<2x4xf32>
    tpu.vector_store %arg8[%c4_15, %c0_16], %0 {strides = array<i32>} : memref<6x9xf32, #tpu.memory_space<vmem>>, vector<2x4xf32>,
    %c2_i32 = arith.constant 2 : i32
    %24 = vector.broadcast %c2_i32 : i32 to vector<2x3xi32>
    %25 = arith.cmpi eq, %2, %24 : vector<2x3xi32>
    %26 = arith.extui %25 : vector<2x3xi1> to vector<2x3xi32>
    %27 = arith.sitofp %26 : vector<2x3xi32> to vector<2x3xf32>
    %c4_17 = arith.constant 4 : index
    %c4_18 = arith.constant 4 : index
    %28 = vector.load %arg8[%c4_17, %c4_18] : memref<6x9xf32, #tpu.memory_space<vmem>>, vector<2x3xf32>
    tpu.vector_store %arg8[%c4_17, %c4_18], %27 {strides = array<i32>} : memref<6x9xf32, #tpu.memory_space<vmem>>, vector<2x3xf32>,
    %c2_19 = arith.constant 2 : index
    %c0_20 = arith.constant 0 : index
    %29 = vector.load %arg2[%c2_19, %c0_20] : memref<3x2xf32, #tpu.memory_space<vmem>>, vector<1x2xf32>
    %30 = vector.broadcast %29 : vector<1x2xf32> to vector<2x2xf32>
    %31 = arith.mulf %1, %30 : vector<2x2xf32>
    %c4_21 = arith.constant 4 : index
    %c7_22 = arith.constant 7 : index
    %32 = vector.load %arg8[%c4_21, %c7_22] : memref<6x9xf32, #tpu.memory_space<vmem>>, vector<2x2xf32>
    tpu.vector_store %arg8[%c4_21, %c7_22], %31 {strides = array<i32>} : memref<6x9xf32, #tpu.memory_space<vmem>>, vector<2x2xf32>,
    %c0_23 = arith.constant 0 : index
    %c0_24 = arith.constant 0 : index
    %33 = vector.load %arg8[%c0_23, %c0_24] : memref<6x9xf32, #tpu.memory_space<vmem>>, vector<6x9xf32>
    %cst = arith.constant 0.000000e+00 : f32
    %34 = vector.broadcast %cst : f32 to vector<6x1xf32>
    %c0_25 = arith.constant 0 : index
    %c0_26 = arith.constant 0 : index
    %35 = vector.load %arg3[%c0_25, %c0_26] : memref<9x32xf32, #tpu.memory_space<vmem>>, vector<9x32xf32>
    %c0_27 = arith.constant 0 : index
    %c0_28 = arith.constant 0 : index
    %36 = vector.load %arg4[%c0_27, %c0_28] : memref<1x32xf32, #tpu.memory_space<vmem>>, vector<1x32xf32>
    %37 = arith.mulf %33, %33 : vector<6x9xf32>
    %cst_29 = arith.constant dense<0.000000e+00> : vector<6xf32>
    %38 = vector.multi_reduction <add>, %37, %cst_29 [1] : vector<6x9xf32> to vector<6xf32>
    %39 = vector.shape_cast %38 : vector<6xf32> to vector<6x1xf32>
    %40 = math.sqrt %39 : vector<6x1xf32>
    %cst_30 = arith.constant 1.1920929E-7 : f32
    %41 = vector.broadcast %cst_30 : f32 to vector<6x1xf32>
    %42 = arith.addf %40, %41 : vector<6x1xf32>
    %cst_31 = arith.constant 1.000000e+00 : f32
    %43 = vector.broadcast %cst_31 : f32 to vector<6x1xf32>
    %44 = arith.divf %43, %42 : vector<6x1xf32>
    %45 = vector.broadcast %44 : vector<6x1xf32> to vector<6x9xf32>
    %46 = arith.mulf %33, %45 : vector<6x9xf32>
    %cst_32 = arith.constant dense<0.000000e+00> : vector<6x32xf32>
    %47 = tpu.matmul %46, %35, %cst_32 {dimension_numbers = #tpu.dot_dimension_numbers<[1], [0], [0], [1], [0, 0, 1, 1], [], []>} : vector<6x9xf32>, vector<9x32xf32>, vector<6x32xf32> -> vector<6x32xf32>
    %48 = vector.broadcast %36 : vector<1x32xf32> to vector<6x32xf32>
    %49 = arith.addf %47, %48 : vector<6x32xf32>
    %cst_33 = arith.constant 0.000000e+00 : f32
    %50 = vector.broadcast %cst_33 : f32 to vector<6x32xf32>
    %51 = arith.maximumf %49, %50 : vector<6x32xf32>
    %52 = arith.mulf %51, %51 : vector<6x32xf32>
    %cst_34 = arith.constant dense<0.000000e+00> : vector<6xf32>
    %53 = vector.multi_reduction <add>, %52, %cst_34 [1] : vector<6x32xf32> to vector<6xf32>
    %54 = vector.shape_cast %53 : vector<6xf32> to vector<6x1xf32>
    %cst_35 = arith.constant 3.200000e+01 : f32
    %55 = vector.broadcast %cst_35 : f32 to vector<6x1xf32>
    %56 = arith.divf %54, %55 : vector<6x1xf32>
    %57 = arith.addf %34, %56 : vector<6x1xf32>
    %c0_36 = arith.constant 0 : index
    %c0_37 = arith.constant 0 : index
    %58 = vector.load %arg5[%c0_36, %c0_37] : memref<32x32xf32, #tpu.memory_space<vmem>>, vector<32x32xf32>
    %c0_38 = arith.constant 0 : index
    %c0_39 = arith.constant 0 : index
    %59 = vector.load %arg6[%c0_38, %c0_39] : memref<1x32xf32, #tpu.memory_space<vmem>>, vector<1x32xf32>
    %60 = arith.mulf %51, %51 : vector<6x32xf32>
    %cst_40 = arith.constant dense<0.000000e+00> : vector<6xf32>
    %61 = vector.multi_reduction <add>, %60, %cst_40 [1] : vector<6x32xf32> to vector<6xf32>
    %62 = vector.shape_cast %61 : vector<6xf32> to vector<6x1xf32>
    %63 = math.sqrt %62 : vector<6x1xf32>
    %cst_41 = arith.constant 1.1920929E-7 : f32
    %64 = vector.broadcast %cst_41 : f32 to vector<6x1xf32>
    %65 = arith.addf %63, %64 : vector<6x1xf32>
    %cst_42 = arith.constant 1.000000e+00 : f32
    %66 = vector.broadcast %cst_42 : f32 to vector<6x1xf32>
    %67 = arith.divf %66, %65 : vector<6x1xf32>
    %68 = vector.broadcast %67 : vector<6x1xf32> to vector<6x32xf32>
    %69 = arith.mulf %51, %68 : vector<6x32xf32>
    %cst_43 = arith.constant dense<0.000000e+00> : vector<6x32xf32>
    %70 = tpu.matmul %69, %58, %cst_43 {dimension_numbers = #tpu.dot_dimension_numbers<[1], [0], [0], [1], [0, 0, 1, 1], [], []>} : vector<6x32xf32>, vector<32x32xf32>, vector<6x32xf32> -> vector<6x32xf32>
    %71 = vector.broadcast %59 : vector<1x32xf32> to vector<6x32xf32>
    %72 = arith.addf %70, %71 : vector<6x32xf32>
    %cst_44 = arith.constant 0.000000e+00 : f32
    %73 = vector.broadcast %cst_44 : f32 to vector<6x32xf32>
    %74 = arith.maximumf %72, %73 : vector<6x32xf32>
    %75 = arith.mulf %74, %74 : vector<6x32xf32>
    %cst_45 = arith.constant dense<0.000000e+00> : vector<6xf32>
    %76 = vector.multi_reduction <add>, %75, %cst_45 [1] : vector<6x32xf32> to vector<6xf32>
    %77 = vector.shape_cast %76 : vector<6xf32> to vector<6x1xf32>
    %cst_46 = arith.constant 3.200000e+01 : f32
    %78 = vector.broadcast %cst_46 : f32 to vector<6x1xf32>
    %79 = arith.divf %77, %78 : vector<6x1xf32>
    %80 = arith.addf %57, %79 : vector<6x1xf32>
    %c0_47 = arith.constant 0 : index
    %c0_48 = arith.constant 0 : index
    %81 = vector.load %arg7[%c0_47, %c0_48] : memref<6x1xf32, #tpu.memory_space<vmem>>, vector<6x1xf32>
    tpu.vector_store %arg7[%c0_47, %c0_48], %80 {strides = array<i32>} : memref<6x1xf32, #tpu.memory_space<vmem>>, vector<6x1xf32>,
    return
  }
}

</mosaic_0001>

<llo_original>
// kernel: forward.1
$region0: #{forward.1}
  #allocation0 [shape = 'u32[]', space=smem, size = 0x4, offset = 0x4, fixed_abs, tag = 'smem constant byte address 0x4 - core index']
  #allocation1 [shape = 'u32[144,128]{1,0:T(1,128)}', space=vmem, size = 0x12000, scoped, tag = 'internal scratch']
  #allocation2 [shape = 'f32[6,9]{1,0:T(8,128)}', space=vmem, size = 0x1000, scoped, tag = 'scratch operand']
  %s0 = inlined_call_operand.hbm [shape: f32[2,4], index: 0, kind: input, shape index: {}]
  %s1 = inlined_call_operand.hbm [shape: f32[2,2], index: 1, kind: input, shape index: {}]
  %s2 = inlined_call_operand.vmem [shape: f32[3,2], index: 2, kind: input, shape index: {}]
  %s3 = inlined_call_operand.vmem [shape: f32[9,32], index: 3, kind: input, shape index: {}]
  %s4 = inlined_call_operand.vmem [shape: f32[1,32], index: 4, kind: input, shape index: {}]
  %s5 = inlined_call_operand.hbm [shape: f32[32,32], index: 5, kind: input, shape index: {}]
  %s6 = inlined_call_operand.vmem [shape: f32[1,32], index: 6, kind: input, shape index: {}]
  %s7 = inlined_call_operand.vmem [shape: f32[6,1], index: 7, kind: output, shape index: {}]
  %s8 = sld [smem:[#allocation0]]
  $region50: #{forward.1} parent=0
    _
  %s10 = ssub.s32 1, %s8
  %s11 = scalar_select 0, %s10, %s8
  $region1: #{forward.1} parent=0
    #allocation3 [shape = 'u8[1024]{0}', space=vmem, size = 0x400, scoped, tag = 'input window, operand 0, single buffered']
    #allocation4 [shape = 's32[1]{0}', space=sflag, size = 0x4, scoped, tag = 'scoped memory for forward.1']
    #allocation5 [shape = 'u8[1024]{0}', space=vmem, size = 0x400, scoped, tag = 'input window, operand 1, single buffered']
    #allocation6 [shape = 's32[1]{0}', space=sflag, size = 0x4, scoped, tag = 'scoped memory for forward.1']
    #allocation7 [shape = 'u8[16384]{0}', space=vmem, size = 0x4000, scoped, tag = 'input window, operand 5, single buffered']
    %12 = vsyncpa [#allocation4], 0
    %13 = vsyncpa [#allocation6], 0
    // Predicated region
    $region2: #{forward.1} parent=1 // pred_check
      _
    $region3: #{forward.1} parent=1 // pred_check_branch
      %15 = sbr.rel (0) target = $region5
    $region4: #{forward.1} parent=1 // pred_region
      %s17 = ssub.s32 32, 32
      %18 = vsyncadd [#allocation4], %s17
      %s20 = sshll.u32 [#allocation3], 4
      %s21 = int_to_ptr.vmem [resolvable:$true] %s20
      %23 = dma.hbm_to_vmem [thread:$0]  %s0, 32, %s21, [#allocation4]
    $region5: #{forward.1} parent=1 // pred_fallthru
      _
    // Predicated region
    $region6: #{forward.1} parent=1 // pred_check
      _
    $region7: #{forward.1} parent=1 // pred_check_branch
      %25 = sbr.rel (0) target = $region9
    $region8: #{forward.1} parent=1 // pred_region
      %s27 = ssub.s32 32, 32
      %28 = vsyncadd [#allocation6], %s27
      %s30 = sshll.u32 [#allocation5], 4
      %s31 = int_to_ptr.vmem [resolvable:$true] %s30
      %33 = dma.hbm_to_vmem [thread:$0]  %s1, 32, %s31, [#allocation6]
    $region9: #{forward.1} parent=1 // pred_fallthru
      _
    // Predicated region
    $region10: #{forward.1} parent=1 // pred_check
      _
    $region11: #{forward.1} parent=1 // pred_check_branch
      %35 = sbr.rel (0) target = $region13
    $region12: #{forward.1} parent=1 // pred_region
      _
    $region13: #{forward.1} parent=1 // pred_fallthru
      _
    // Predicated region
    $region14: #{forward.1} parent=1 // pred_check
      _
    $region15: #{forward.1} parent=1 // pred_check_branch
      %37 = sbr.rel (0) target = $region17
    $region16: #{forward.1} parent=1 // pred_region
      _
    $region17: #{forward.1} parent=1 // pred_fallthru
      _
    // Predicated region
    $region18: #{forward.1} parent=1 // pred_check
      _
    $region19: #{forward.1} parent=1 // pred_check_branch
      %39 = sbr.rel (0) target = $region21
    $region20: #{forward.1} parent=1 // pred_region
      _
    $region21: #{forward.1} parent=1 // pred_fallthru
      _
    // Predicated region
    $region22: #{forward.1} parent=1 // pred_check
      _
    $region23: #{forward.1} parent=1 // pred_check_branch
      %41 = sbr.rel (0) target = $region25
    $region24: #{forward.1} parent=1 // pred_region
      %s43 = ssub.s32 512, 512
      %44 = vsyncadd [#allocation6], %s43
      %s45 = sshll.u32 [#allocation7], 4
      %s46 = int_to_ptr.vmem [resolvable:$true] %s45
      %51 = dma.hbm_to_vmem [thread:$0]  %s5, 512, %s46, [#allocation6], 128, 128, 8
    $region25: #{forward.1} parent=1 // pred_fallthru
      _
    // Predicated region
    $region26: #{forward.1} parent=1 // pred_check
      _
    $region27: #{forward.1} parent=1 // pred_check_branch
      %53 = sbr.rel (0) target = $region29
    $region28: #{forward.1} parent=1 // pred_region
      _
    $region29: #{forward.1} parent=1 // pred_fallthru
      _
    // Predicated region
    $region30: #{forward.1} parent=1 // pred_check
      _
    $region31: #{forward.1} parent=1 // pred_check_branch
      %55 = sbr.rel (0) target = $region33
    $region32: #{forward.1} parent=1 // pred_region
      %56 = dma.done [#allocation4], 32
    $region33: #{forward.1} parent=1 // pred_fallthru
      _
    // Predicated region
    $region34: #{forward.1} parent=1 // pred_check
      _
    $region35: #{forward.1} parent=1 // pred_check_branch
      %58 = sbr.rel (0) target = $region37
    $region36: #{forward.1} parent=1 // pred_region
      %59 = dma.done [#allocation6], 32
    $region37: #{forward.1} parent=1 // pred_fallthru
      _
    // Predicated region
    $region38: #{forward.1} parent=1 // pred_check
      _
    $region39: #{forward.1} parent=1 // pred_check_branch
      %61 = sbr.rel (0) target = $region41
    $region40: #{forward.1} parent=1 // pred_region
      %62 = dma.done [#allocation6], 512
    $region41: #{forward.1} parent=1 // pred_fallthru
      _
    %v63 = vld [vmem:[#allocation3] sm:$0x3]
    %v64 = vld [vmem:[#allocation5] sm:$0x3]
    %v65 = vlaneseq
    %v66 = vand.u32 %v65, 127
    %vm67 = vcmask 25600
    %68 = vst.msk [vmem:[#allocation2] sm:$0x3] %vm67, %v63
    %vm69 = vcmp.eq.s32.totalorder %v66, 0
    %v70 = vsel %vm69, 1, 0
    %v71 = vcvt.s32.f32 %v70
    %73 = vrot.lane.b32.xlu0 %v71, 4
    %v74 = vpop.permute.xlu0 %73
    %vm76 = vcmask 50208
    %77 = vst.msk [vmem:[#allocation2] sm:$0x3] %vm76, %v74
    %v78 = vld [vmem:[%s2] sm:$0x1]
    %v79 = vlaneseq
    %v80 = vshrl.u32 %v79, 7
    %v81 = vsub.s32 0, %v80
    %v82 = vrot.slane %v78, %v81
    %v83 = vmul.f32 %v64, %v82
    %85 = vrot.lane.b32.xlu0 %v83, 7
    %v86 = vpop.permute.xlu0 %85
    %vm88 = vcmask 66616
    %89 = vst.msk [vmem:[#allocation2] sm:$0x3] %vm88, %v86
    %90 = vst.msk [vmem:[#allocation2 + $0x2] sm:$0x3] %vm67, %v63
    %vm91 = vcmp.eq.s32.totalorder %v66, 1
    %v92 = vsel %vm91, 1, 0
    %v93 = vcvt.s32.f32 %v92
    %95 = vrot.lane.b32.xlu0 %v93, 4
    %v96 = vpop.permute.xlu0 %95
    %98 = vst.msk [vmem:[#allocation2 + $0x2] sm:$0x3] %vm76, %v96
    %v99 = vld [vmem:[%s2 + $0x1] sm:$0x1]
    %v100 = vlaneseq
    %v101 = vshrl.u32 %v100, 7
    %v102 = vsub.s32 0, %v101
    %v103 = vrot.slane %v99, %v102
    %v104 = vmul.f32 %v64, %v103
    %106 = vrot.lane.b32.xlu0 %v104, 7
    %v107 = vpop.permute.xlu0 %106
    %109 = vst.msk [vmem:[#allocation2 + $0x2] sm:$0x3] %vm88, %v107
    %110 = vst.msk [vmem:[#allocation2 + $0x4] sm:$0x3] %vm67, %v63
    %vm111 = vcmp.eq.s32.totalorder %v66, 2
    %v112 = vsel %vm111, 1, 0
    %v113 = vcvt.s32.f32 %v112
    %115 = vrot.lane.b32.xlu0 %v113, 4
    %v116 = vpop.permute.xlu0 %115
    %118 = vst.msk [vmem:[#allocation2 + $0x4] sm:$0x3] %vm76, %v116
    %v119 = vld [vmem:[%s2 + $0x2] sm:$0x1]
    %v120 = vlaneseq
    %v121 = vshrl.u32 %v120, 7
    %v122 = vsub.s32 0, %v121
    %v123 = vrot.slane %v119, %v122
    %v124 = vmul.f32 %v64, %v123
    %126 = vrot.lane.b32.xlu0 %v124, 7
    %v127 = vpop.permute.xlu0 %126
    %129 = vst.msk [vmem:[#allocation2 + $0x4] sm:$0x3] %vm88, %v127
    %v130 = vld [vmem:[#allocation2] sm:$0x3f]
    %v131 = vld [vmem:[%s3] sm:$0xff]
    %v132 = vld [vmem:[%s3 + $0x8] sm:$0x1]
    %v133 = vld [vmem:[%s4] sm:$0x1]
    %v134 = vmul.f32 %v130, %v130
    %vm135 = vcmask 70656
    %v136 = vsel %vm135, %v134, 0.0
    %137 = vadd.xlane.f32.xlu0 %v136
    %v138 = vpop.xlane.xlu0 %137
    %v139 = vrsqrt.pop %v138
    %v140 = vmul.f32 %v138, %v139
    %vm141 = vcmp.eq.f32.partialorder %v138, inf
    %v142 = vsel %vm141, %v138, %v140
    %vm143 = vcmp.eq.f32.partialorder %v138, 0.0
    %v144 = vand.u32 %v138, 2147483648
    %v145 = vsel %vm143, %v144, %v142
    %v146 = vadd.f32 %v145, 1.1920929e-07
    %v147 = vrcp.pop %v146
    %v148 = vmul.f32 1.0, %v147
    %v149 = vmul.f32 %v130, %v148
    %v151 = vlaneseq
    %v152 = vshrl.u32 %v151, 7
    %v153 = vsub.s32 0, %v152
    %v154 = vrot.slane %v133, %v153
    %vm156 = vcmask 72704
    %v158 = vsel %vm156, %v149, 0
    %vm160 = vcmask 1040384
    %v162 = vsel %vm160, %v132, 0
    %164 = vmatprep.subr.mxu0 0.0
    %165 = vmatpush1.msra.mxu0 %v131
    %166 = vmatprep.subr.mxu0 0.0
    %167 = vmatpush1.msra.mxu0 %v162
    %168 = vmatprep.subr.mxu0 0.0
    %169 = vmatpush1.msra.mxu0 0.0
    %170 = vmatprep.subr.mxu0 0.0
    %171 = vmatpush1.msra.mxu0 0.0
    %172 = vmatprep.subr.mxu0 0.0
    %173 = vmatpush1.msra.mxu0 0.0
    %174 = vmatprep.subr.mxu0 0.0
    %175 = vmatpush1.msra.mxu0 0.0
    %176 = vmatprep.subr.mxu0 0.0
    %177 = vmatpush1.msra.mxu0 0.0
    %178 = vmatprep.subr.mxu0 0.0
    %179 = vmatpush1.msra.mxu0 0.0
    %180 = vmatprep.subr.mxu0 0.0
    %181 = vmatpush1.msra.mxu0 0.0
    %182 = vmatprep.subr.mxu0 0.0
    %183 = vmatpush1.msra.mxu0 0.0
    %184 = vmatprep.subr.mxu0 0.0
    %185 = vmatpush1.msra.mxu0 0.0
    %186 = vmatprep.subr.mxu0 0.0
    %187 = vmatpush1.msra.mxu0 0.0
    %188 = vmatprep.subr.mxu0 0.0
    %189 = vmatpush1.msra.mxu0 0.0
    %190 = vmatprep.subr.mxu0 0.0
    %191 = vmatpush1.msra.mxu0 0.0
    %192 = vmatprep.subr.mxu0 0.0
    %193 = vmatpush1.msra.mxu0 0.0
    %194 = vmatprep.subr.mxu0 0.0
    %195 = vmatpush1.msra.mxu0 0.0
    %196 = vmatprep.subr.mxu0 0.0
    %197 = vmatpush1.msra.mxu0 0.0
    %198 = vmatprep.subr.mxu0 0.0
    %199 = vmatpush1.msra.mxu0 0.0
    %200 = vmatprep.subr.mxu0 0.0
    %201 = vmatpush1.msra.mxu0 0.0
    %202 = vmatprep.subr.mxu0 0.0
    %203 = vmatpush1.msra.mxu0 0.0
    %204 = vmatprep.subr.mxu0 0.0
    %205 = vmatpush1.msra.mxu0 0.0
    %206 = vmatprep.subr.mxu0 0.0
    %207 = vmatpush1.msra.mxu0 0.0
    %208 = vmatprep.subr.mxu0 0.0
    %209 = vmatpush1.msra.mxu0 0.0
    %210 = vmatprep.subr.mxu0 0.0
    %211 = vmatpush1.msra.mxu0 0.0
    %212 = vmatprep.subr.mxu0 0.0
    %213 = vmatpush1.msra.mxu0 0.0
    %214 = vmatprep.subr.mxu0 0.0
    %215 = vmatpush1.msra.mxu0 0.0
    %216 = vmatprep.subr.mxu0 0.0
    %217 = vmatpush1.msra.mxu0 0.0
    %218 = vmatprep.subr.mxu0 0.0
    %219 = vmatpush1.msra.mxu0 0.0
    %220 = vmatprep.subr.mxu0 0.0
    %221 = vmatpush1.msra.mxu0 0.0
    %222 = vmatprep.subr.mxu0 0.0
    %223 = vmatpush1.msra.mxu0 0.0
    %224 = vmatprep.subr.mxu0 0.0
    %225 = vmatpush1.msra.mxu0 0.0
    %226 = vmatprep.subr.mxu0 0.0
    %227 = vmatpush1.msra.mxu0 0.0
    %228 = vmatprep.mubr.f32.mxu0 0.0
    %229 = vmatmul.mubr.f32.gmra.mrb[0].mxu0 %v158
    %v230 = vpop.f32.mrb[0].mxu0
    %v231 = vadd.f32 %v154, %v230
    %v232 = vpop.f32.mrb[0].mxu0
    %233 = vdwg.mxu0
    %v234 = vmax.f32 %v231, 0.0
    %v235 = vmul.f32 %v234, %v234
    %vm236 = vcmask 259072
    %v237 = vsel %vm236, %v235, 0.0
    %238 = vadd.xlane.f32.xlu0 %v237
    %v239 = vpop.xlane.xlu0 %238
    %v240 = vrcp.pop 32.0
    %v241 = vmul.f32 %v239, %v240
    %v242 = vadd.f32 %v241, 0.0
    %v243 = vld [vmem:[#allocation7] sm:$0xff]
    %v244 = vld [vmem:[#allocation7 + $0x8] sm:$0xff]
    %v245 = vld [vmem:[#allocation7 + $0x10] sm:$0xff]
    %v246 = vld [vmem:[#allocation7 + $0x18] sm:$0xff]
    %v247 = vld [vmem:[%s6] sm:$0x1]
    %v248 = vrsqrt.pop %v239
    %v249 = vmul.f32 %v239, %v248
    %vm250 = vcmp.eq.f32.partialorder %v239, inf
    %v251 = vsel %vm250, %v239, %v249
    %vm252 = vcmp.eq.f32.partialorder %v239, 0.0
    %v253 = vand.u32 %v239, 2147483648
    %v254 = vsel %vm252, %v253, %v251
    %v255 = vadd.f32 %v254, 1.1920929e-07
    %v256 = vrcp.pop %v255
    %v257 = vmul.f32 1.0, %v256
    %v258 = vmul.f32 %v234, %v257
    %v260 = vlaneseq
    %v261 = vshrl.u32 %v260, 7
    %v262 = vsub.s32 0, %v261
    %v263 = vrot.slane %v247, %v262
    %vm265 = vcmask 261120
    %v267 = vsel %vm265, %v258, 0
    %269 = vmatprep.subr.mxu0 0.0
    %270 = vmatpush1.msra.mxu0 %v243
    %271 = vmatprep.subr.mxu0 0.0
    %272 = vmatpush1.msra.mxu0 %v244
    %273 = vmatprep.subr.mxu0 0.0
    %274 = vmatpush1.msra.mxu0 %v245
    %275 = vmatprep.subr.mxu0 0.0
    %276 = vmatpush1.msra.mxu0 %v246
    %277 = vmatprep.subr.mxu0 0.0
    %278 = vmatpush1.msra.mxu0 0.0
    %279 = vmatprep.subr.mxu0 0.0
    %280 = vmatpush1.msra.mxu0 0.0
    %281 = vmatprep.subr.mxu0 0.0
    %282 = vmatpush1.msra.mxu0 0.0
    %283 = vmatprep.subr.mxu0 0.0
    %284 = vmatpush1.msra.mxu0 0.0
    %285 = vmatprep.subr.mxu0 0.0
    %286 = vmatpush1.msra.mxu0 0.0
    %287 = vmatprep.subr.mxu0 0.0
    %288 = vmatpush1.msra.mxu0 0.0
    %289 = vmatprep.subr.mxu0 0.0
    %290 = vmatpush1.msra.mxu0 0.0
    %291 = vmatprep.subr.mxu0 0.0
    %292 = vmatpush1.msra.mxu0 0.0
    %293 = vmatprep.subr.mxu0 0.0
    %294 = vmatpush1.msra.mxu0 0.0
    %295 = vmatprep.subr.mxu0 0.0
    %296 = vmatpush1.msra.mxu0 0.0
    %297 = vmatprep.subr.mxu0 0.0
    %298 = vmatpush1.msra.mxu0 0.0
    %299 = vmatprep.subr.mxu0 0.0
    %300 = vmatpush1.msra.mxu0 0.0
    %301 = vmatprep.subr.mxu0 0.0
    %302 = vmatpush1.msra.mxu0 0.0
    %303 = vmatprep.subr.mxu0 0.0
    %304 = vmatpush1.msra.mxu0 0.0
    %305 = vmatprep.subr.mxu0 0.0
    %306 = vmatpush1.msra.mxu0 0.0
    %307 = vmatprep.subr.mxu0 0.0
    %308 = vmatpush1.msra.mxu0 0.0
    %309 = vmatprep.subr.mxu0 0.0
    %310 = vmatpush1.msra.mxu0 0.0
    %311 = vmatprep.subr.mxu0 0.0
    %312 = vmatpush1.msra.mxu0 0.0
    %313 = vmatprep.subr.mxu0 0.0
    %314 = vmatpush1.msra.mxu0 0.0
    %315 = vmatprep.subr.mxu0 0.0
    %316 = vmatpush1.msra.mxu0 0.0
    %317 = vmatprep.subr.mxu0 0.0
    %318 = vmatpush1.msra.mxu0 0.0
    %319 = vmatprep.subr.mxu0 0.0
    %320 = vmatpush1.msra.mxu0 0.0
    %321 = vmatprep.subr.mxu0 0.0
    %322 = vmatpush1.msra.mxu0 0.0
    %323 = vmatprep.subr.mxu0 0.0
    %324 = vmatpush1.msra.mxu0 0.0
    %325 = vmatprep.subr.mxu0 0.0
    %326 = vmatpush1.msra.mxu0 0.0
    %327 = vmatprep.subr.mxu0 0.0
    %328 = vmatpush1.msra.mxu0 0.0
    %329 = vmatprep.subr.mxu0 0.0
    %330 = vmatpush1.msra.mxu0 0.0
    %331 = vmatprep.subr.mxu0 0.0
    %332 = vmatpush1.msra.mxu0 0.0
    %333 = vmatprep.mubr.f32.mxu0 0.0
    %334 = vmatmul.mubr.f32.gmra.mrb[0].mxu0 %v267
    %v335 = vpop.f32.mrb[0].mxu0
    %v336 = vadd.f32 %v263, %v335
    %v337 = vpop.f32.mrb[0].mxu0
    %338 = vdwg.mxu0
    %v339 = vmax.f32 %v336, 0.0
    %v340 = vmul.f32 %v339, %v339
    %v341 = vsel %vm236, %v340, 0.0
    %342 = vadd.xlane.f32.xlu0 %v341
    %v343 = vpop.xlane.xlu0 %342
    %v344 = vmul.f32 %v343, %v240
    %v345 = vadd.f32 %v242, %v344
    %vm346 = vcmask 5120
    %347 = vst.msk [vmem:[%s7] sm:$0x3f] %vm346, %v345
    // Predicated region
    $region42: #{forward.1} parent=1 // pred_check
      _
    $region43: #{forward.1} parent=1 // pred_check_branch
      %349 = sbr.rel (0) target = $region45
    $region44: #{forward.1} parent=1 // pred_region
      _
    $region45: #{forward.1} parent=1 // pred_fallthru
      _
    // Predicated region
    $region46: #{forward.1} parent=1 // pred_check
      _
    $region47: #{forward.1} parent=1 // pred_check_branch
      %351 = sbr.rel (0) target = $region49
    $region48: #{forward.1} parent=1 // pred_region
      _
    $region49: #{forward.1} parent=1 // pred_fallthru
      _
    %352 = vsyncpa [#allocation4], 1
    %353 = vsyncpa [#allocation6], 1

</llo_original>
